<compile_context>
chip_gen: v6e
topology: v6e:2x2x1
jax: 0.10.0
libtpu: 0.0.40
codegen_flags: <defaults>
</compile_context>

<pallas_src>
import jax
import jax.numpy as jnp
from jax import lax
from jax.experimental import pallas as pl
from jax.experimental.pallas import tpu as pltpu

_LN_EPS = 1e-5


def _ln_relu_cols(x, gamma_col, beta_col):
    """LayerNorm over the feature (sublane) axis + ReLU; batch is on lanes.

    One-pass statistics: var = E[x^2] - mu^2 (halves the cross-lane reduce
    traffic vs mean-then-centered-variance)."""
    inv_h = 1.0 / x.shape[0]
    mu = jnp.sum(x, axis=0, keepdims=True) * inv_h              # (1, TB)
    ex2 = jnp.sum(x * x, axis=0, keepdims=True) * inv_h         # (1, TB)
    var = ex2 - mu * mu
    y = (x - mu) * lax.rsqrt(var + _LN_EPS) * gamma_col + beta_col
    return jnp.maximum(y, 0.0)


def make_deepfm_kernel(cate_field, vocab, emb_dim, num_layers):
    Kf, N, D, L = cate_field, vocab, emb_dim, num_layers

    def kernel(cont_ref, cate_ref, pcont_ref, pcat_ref, *rest):
        # rest = [b0, g0, be0, (Wt, b, g, be) * (L-1), w_out, b_out, out_ref]
        out_ref = rest[-1]
        params = rest[:-1]

        a_cont = cont_ref[...]                    # (2Cf, TB) f32: [conts ; conts^2]
        cates_t = cate_ref[...]                   # (Kf, TB)  i32
        TB = a_cont.shape[1]

        # ---- lane-dense one-hots for the categorical fields: (Kf*N, TB) ----
        iota_n = lax.broadcasted_iota(jnp.int32, (N, TB), 0)
        onehot = jnp.concatenate(
            [jnp.where(iota_n == cates_t[j:j + 1, :], 1.0, 0.0)
             for j in range(Kf)],
            axis=0)                                              # (Kf*N, TB)

        # ---- single fused table matmul ---------------------------------------
        # rows of y: [ field_sum (D) ; sum_of_squares (D) ; h0 pre-bias (H0) ]
        y = (jnp.dot(pcont_ref[...], a_cont,
                     preferred_element_type=jnp.float32)
             + jnp.dot(pcat_ref[...], onehot,
                       preferred_element_type=jnp.float32))      # (2D+H0, TB)

        field_sum = y[0:D, :]                                    # (D, TB)
        sum_sq = y[D:2 * D, :]                                   # (D, TB)
        h = y[2 * D:, :] + params[0][...]                        # + b0 (H0, 1)

        # ---- FM order-2 (0.5 folded into the reducing vector) ----------------
        ix = field_sum * field_sum - sum_sq                      # (D, TB)
        half = jnp.full((1, D), 0.5, jnp.float32)
        fm_row = jnp.dot(half, ix,
                         preferred_element_type=jnp.float32)     # (1, TB)

        # ---- DNN: Linear -> LayerNorm -> ReLU, batch on lanes ----------------
        h = _ln_relu_cols(h, params[1][...], params[2][...])
        for l in range(1, L):
            base = 3 + 4 * (l - 1)
            h = (jnp.dot(params[base][...], h,                   # W_l^T (Hout,Hin)
                         preferred_element_type=jnp.float32)
                 + params[base + 1][...])                        # + b_l (Hout, 1)
            h = _ln_relu_cols(h, params[base + 2][...], params[base + 3][...])

        w_out = params[3 + 4 * (L - 1)][...]                     # (1, H_last)
        b_out = params[3 + 4 * (L - 1) + 1][...]                 # (1, 1)
        dnn_row = jnp.dot(w_out, h,
                          preferred_element_type=jnp.float32)    # (1, TB)

        # lane-dense (1, TB) store -> unmasked vst
        out_ref[...] = jax.nn.sigmoid(fm_row + dnn_row + b_out)

    return kernel


def _prep_tables(emb, W0, cont_field, cate_field):
    """Fold the embedding table, its square, and the first Linear layer into two
    precomputed matrices consumed by the fused in-kernel matmul."""
    Cf, Kf = cont_field, cate_field
    N, D = emb.shape
    F = Cf + Kf
    H0 = W0.shape[1]
    hp = jax.lax.Precision.HIGHEST

    W0b = W0.reshape(F, D, H0)                    # block f = W0[f*D:(f+1)*D, :]
    emb_cont = emb[:Cf]                           # (Cf, D)

    # M_cont[i, :] = emb[i] @ W0_i           -> continuous first-layer fold
    M_cont = jnp.einsum('cd,cdh->ch', emb_cont, W0b[:Cf], precision=hp)
    # T_cat[j*N+n, :] = emb[n] @ W0_{Cf+j}   -> categorical first-layer fold
    T_cat = jnp.einsum('nd,jdh->jnh', emb, W0b[Cf:], precision=hp)
    T_cat = T_cat.reshape(Kf * N, H0)

    rows = 2 * D + H0
    # P_cont acts on [conts ; conts^2] (2Cf, TB)
    P_cont = jnp.zeros((rows, 2 * Cf), jnp.float32)
    P_cont = P_cont.at[0:D, 0:Cf].set(emb_cont.T)                  # field_sum
    P_cont = P_cont.at[D:2 * D, Cf:2 * Cf].set((emb_cont * emb_cont).T)  # sum_sq
    P_cont = P_cont.at[2 * D:, 0:Cf].set(M_cont.T)                 # h0

    # P_cat acts on the concatenated per-field one-hots (Kf*N, TB)
    P_cat = jnp.concatenate([
        jnp.tile(emb.T, (1, Kf)),                                  # field_sum
        jnp.tile((emb * emb).T, (1, Kf)),                          # sum_sq
        T_cat.T,                                                   # h0
    ], axis=0).astype(jnp.float32)                                 # (rows, Kf*N)

    return P_cont, P_cat


def deepfm_forward(conts, cates, combs, params, *, block_b=1024):
    """Pallas DeepFM forward. `combs` mirrors the PyTorch signature (unused)."""
    del combs  # not used by DeepFM.forward
    emb = params["emb"]                  # (N, D)
    layers = params["layers"]            # [(W (in,out), b (1,H), g (1,H), be (1,H))]
    w_out = params["w_out"]              # (1, H_last)
    b_out = params["b_out"]              # (1, 1)

    B, Cf = conts.shape
    Kf = cates.shape[1]
    N, D = emb.shape
    L = len(layers)
    H = [W.shape[1] for (W, _, _, _) in layers]
    rows = 2 * D + H[0]

    # ---- batch tiling on the lane axis ------------------------------------
    LANE = 128
    assert block_b % LANE == 0
    b_ceil = ((B + LANE - 1) // LANE) * LANE
    if b_ceil > block_b:
        TB = block_b
    elif b_ceil >= 2 * LANE:
        # split a single-tile batch into >=2 lane-aligned tiles so the
        # "parallel" grid axis engages both v7x TensorCores.
        TB = ((b_ceil // 2 + LANE - 1) // LANE) * LANE
    else:
        TB = b_ceil
    G = pl.cdiv(B, TB)
    B_pad = G * TB

    conts_p = jnp.pad(conts.astype(jnp.float32), ((0, B_pad - B), (0, 0)))
    cates_p = jnp.pad(cates.astype(jnp.int32), ((0, B_pad - B), (0, 0)))

    # batch-on-lanes inputs (layout plumbing only; tiny wrapper-side work)
    cont_feats = jnp.concatenate([conts_p, conts_p * conts_p], axis=1).T  # (2Cf, B_pad)
    cates_t = cates_p.T                                                   # (Kf, B_pad)

    # fused precomputed tables (embedding / emb^2 / first Linear folds)
    P_cont, P_cat = _prep_tables(emb, layers[0][0], Cf, Kf)

    def col(v):  # (1, H) -> (H, 1) column (broadcasts over the lane=batch axis)
        return v.reshape(-1, 1).astype(jnp.float32)

    flat_params = [col(layers[0][1]), col(layers[0][2]), col(layers[0][3])]
    for (W, b, g, be) in layers[1:]:
        flat_params += [W.T.astype(jnp.float32), col(b), col(g), col(be)]
    flat_params += [w_out.astype(jnp.float32), b_out.astype(jnp.float32)]

    def const_spec(arr):
        return pl.BlockSpec(arr.shape, lambda i: (0,) * arr.ndim)

    in_specs = [
        pl.BlockSpec((2 * Cf, TB), lambda i: (0, i)),
        pl.BlockSpec((Kf, TB), lambda i: (0, i)),
        const_spec(P_cont),
        const_spec(P_cat),
    ] + [const_spec(a) for a in flat_params]

    out_specs = pl.BlockSpec((1, TB), lambda i: (0, i))            # lane-dense
    out_shape = jax.ShapeDtypeStruct((1, B_pad), jnp.float32)

    # Advisory cost estimate for XLA scheduling.
    flops_per_ex = (2 * rows * (2 * Cf) + 2 * rows * (Kf * N)      # fused matmuls
                    + 2 * Kf * N                                   # one-hot build
                    + 5 * D                                        # ix + FM reduce
                    + sum(8 * h for h in H)                        # LN + ReLU
                    + sum(2 * a * b + b for a, b in zip(H[:-1], H[1:]))
                    + 2 * H[-1] + 4)                               # output + sigmoid
    cost = pl.CostEstimate(
        flops=int(B_pad * flops_per_ex),
        transcendentals=int(B_pad * (L + 1)),
        bytes_accessed=int(4 * (cont_feats.size + cates_t.size + B_pad
                                + P_cont.size + P_cat.size
                                + sum(p.size for p in flat_params))),
    )

    kernel = make_deepfm_kernel(Kf, N, D, L)
    out = pl.pallas_call(
        kernel,
        out_shape=out_shape,
        grid_spec=pltpu.PrefetchScalarGridSpec(
            num_scalar_prefetch=0,
            grid=(G,),
            in_specs=in_specs,
            out_specs=out_specs,
        ),
        compiler_params=pltpu.CompilerParams(
            dimension_semantics=("parallel",),      # megacore sharding on v7x
            vmem_limit_bytes=32 * 1024 * 1024,      # headroom for larger block_b
        ),
        cost_estimate=cost,
    )(cont_feats, cates_t, P_cont, P_cat, *flat_params)
    return out[0, :B].reshape(B, 1)


def deepfm_reference(conts, cates, combs, params):
    """Pure-JAX reference mirroring the PyTorch forward (HIGHEST precision)."""
    del combs
    emb = params["emb"]
    B, Cf = conts.shape
    cont_e = emb[:Cf][None, :, :] * conts[:, :, None]            # (B, Cf, D)
    cate_e = emb[cates]                                          # (B, Kf, D)
    cc = jnp.concatenate([cont_e, cate_e], axis=1)               # (B, F, D)
    sq_of_sum = jnp.sum(cc, axis=1) ** 2
    sum_of_sq = jnp.sum(cc * cc, axis=1)
    x_fm = 0.5 * jnp.sum(sq_of_sum - sum_of_sq, axis=1, keepdims=True)
    x = cc.reshape(B, -1)
    for (W, b, g, be) in params["layers"]:
        x = jnp.dot(x, W, precision=jax.lax.Precision.HIGHEST) + b
        mu = jnp.mean(x, axis=-1, keepdims=True)
        var = jnp.mean((x - mu) ** 2, axis=-1, keepdims=True)
        x = (x - mu) / jnp.sqrt(var + _LN_EPS) * g + be
        x = jax.nn.relu(x)
    x = jnp.dot(x, params["w_out"].T,
                precision=jax.lax.Precision.HIGHEST) + params["b_out"]
    return jax.nn.sigmoid(x_fm + x)


if __name__ == "__main__":
    # Small shapes consistent with the module.
    cont_field, cate_field = 4, 4
    cate_cont_feature = 32
    emb_dim = 16
    hidden_dims = [32, 32]
    B = 8

    key = jax.random.PRNGKey(0)
    keys = jax.random.split(key, 16)

    # Embedding init: uniform(-a, a), a = (3 / (cate_field * emb_dim))^2.
    a_emb = (3.0 / (cate_field * emb_dim)) ** 2
    emb = jax.random.uniform(keys[0], (cate_cont_feature, emb_dim), jnp.float32,
                             minval=-a_emb, maxval=a_emb)

    F = cont_field + cate_field
    dims = [F * emb_dim] + hidden_dims
    layers = []
    for l, (din, dout) in enumerate(zip(dims[:-1], dims[1:])):
        lim = (6.0 / (din + dout)) ** 0.5        # xavier_uniform, gain=1
        W = jax.random.uniform(keys[1 + 2 * l], (din, dout), jnp.float32,
                               minval=-lim, maxval=lim)     # stored as (in, out)
        bb = jax.random.uniform(keys[2 + 2 * l], (1, dout), jnp.float32,
                                minval=-1.0 / din ** 0.5, maxval=1.0 / din ** 0.5)
        g = jnp.ones((1, dout), jnp.float32)                # LayerNorm gamma
        be = jnp.zeros((1, dout), jnp.float32)              # LayerNorm beta
        layers.append((W, bb, g, be))
    lim = (6.0 / (hidden_dims[-1] + 1)) ** 0.5
    w_out = jax.random.uniform(keys[10], (1, hidden_dims[-1]), jnp.float32,
                               minval=-lim, maxval=lim)
    b_out = jax.random.uniform(keys[11], (1, 1), jnp.float32,
                               minval=-1.0 / hidden_dims[-1] ** 0.5,
                               maxval=1.0 / hidden_dims[-1] ** 0.5)

    params = {"emb": emb, "layers": layers, "w_out": w_out, "b_out": b_out}

    conts = jax.random.normal(keys[12], (B, cont_field), jnp.float32)
    cates = jax.random.randint(keys[13], (B, cate_field), 0,
                               cate_cont_feature, jnp.int32)
    combs = jax.random.randint(keys[14], (B, cate_field), 0,
                               cate_cont_feature, jnp.int32)  # unused in forward

    out = deepfm_forward(conts, cates, combs, params)
    out = jax.block_until_ready(out)

    ref = deepfm_reference(conts, cates, combs, params)
    assert out.shape == (B, 1)
    # In-kernel matmuls use default MXU precision (bf16 passes) vs the
    # HIGHEST-precision reference; tolerance sized accordingly.
    assert jnp.allclose(out, ref, atol=1e-3, rtol=1e-3), (out, ref)

    print("KERNEL_OK")
</pallas_src>

<mosaic_0001>
module attributes {stable_mosaic.version = 11 : i64} {
  func.func @kernel(%arg0: i32, %arg1: memref<8x128xf32, #tpu.memory_space<vmem>>, %arg2: memref<4x128xi32, #tpu.memory_space<vmem>>, %arg3: memref<64x8xf32, #tpu.memory_space<vmem>>, %arg4: memref<64x128xf32, #tpu.memory_space<vmem>>, %arg5: memref<32x1xf32, #tpu.memory_space<vmem>>, %arg6: memref<32x1xf32, #tpu.memory_space<vmem>>, %arg7: memref<32x1xf32, #tpu.memory_space<vmem>>, %arg8: memref<32x32xf32, #tpu.memory_space<vmem>>, %arg9: memref<32x1xf32, #tpu.memory_space<vmem>>, %arg10: memref<32x1xf32, #tpu.memory_space<vmem>>, %arg11: memref<32x1xf32, #tpu.memory_space<vmem>>, %arg12: memref<1x32xf32, #tpu.memory_space<vmem>>, %arg13: memref<1x1xf32, #tpu.memory_space<vmem>>, %arg14: memref<1x128xf32, #tpu.memory_space<vmem>>) attributes {dimension_semantics = [#tpu.dimension_semantics<parallel>], iteration_bounds = array<i64: 1>, scalar_prefetch = 0 : i64, scratch_operands = 0 : i64, tpu.core_type = #tpu.core_type<tc>, window_params = [{transform_indices = @transform_0, window_bounds = array<i64: 8, 128>}, {transform_indices = @transform_1, window_bounds = array<i64: 4, 128>}, {pipeline_mode = #tpu.pipeline_mode<synchronous>, transform_indices = @transform_2, window_bounds = array<i64: 64, 8>}, {pipeline_mode = #tpu.pipeline_mode<synchronous>, transform_indices = @transform_3, window_bounds = array<i64: 64, 128>}, {pipeline_mode = #tpu.pipeline_mode<synchronous>, transform_indices = @transform_4, window_bounds = array<i64: 32, 1>}, {pipeline_mode = #tpu.pipeline_mode<synchronous>, transform_indices = @transform_5, window_bounds = array<i64: 32, 1>}, {pipeline_mode = #tpu.pipeline_mode<synchronous>, transform_indices = @transform_6, window_bounds = array<i64: 32, 1>}, {pipeline_mode = #tpu.pipeline_mode<synchronous>, transform_indices = @transform_7, window_bounds = array<i64: 32, 32>}, {pipeline_mode = #tpu.pipeline_mode<synchronous>, transform_indices = @transform_8, window_bounds = array<i64: 32, 1>}, {pipeline_mode = #tpu.pipeline_mode<synchronous>, transform_indices = @transform_9, window_bounds = array<i64: 32, 1>}, {pipeline_mode = #tpu.pipeline_mode<synchronous>, transform_indices = @transform_10, window_bounds = array<i64: 32, 1>}, {pipeline_mode = #tpu.pipeline_mode<synchronous>, transform_indices = @transform_11, window_bounds = array<i64: 1, 32>}, {pipeline_mode = #tpu.pipeline_mode<synchronous>, transform_indices = @transform_12, window_bounds = array<i64: 1, 1>}, {transform_indices = @transform_13, window_bounds = array<i64: 1, 128>}]} {
    %c0 = arith.constant 0 : index
    %c0_0 = arith.constant 0 : index
    %0 = vector.load %arg1[%c0, %c0_0] : memref<8x128xf32, #tpu.memory_space<vmem>>, vector<8x128xf32>
    %c0_1 = arith.constant 0 : index
    %c0_2 = arith.constant 0 : index
    %1 = vector.load %arg2[%c0_1, %c0_2] : memref<4x128xi32, #tpu.memory_space<vmem>>, vector<4x128xi32>
    %2 = tpu.iota {dimensions = array<i32: 0>} : vector<32x128xi32>
    %3 = vector.extract_strided_slice %1 {offsets = [0, 0], sizes = [1, 128], strides = [1, 1]} : vector<4x128xi32> to vector<1x128xi32>
    %4 = vector.broadcast %3 : vector<1x128xi32> to vector<32x128xi32>
    %5 = arith.cmpi eq, %2, %4 : vector<32x128xi32>
    %cst = arith.constant 1.000000e+00 : f32
    %cst_3 = arith.constant 0.000000e+00 : f32
    %6 = vector.broadcast %cst : f32 to vector<32x128xf32>
    %7 = vector.broadcast %cst_3 : f32 to vector<32x128xf32>
    %8 = arith.select %5, %6, %7 : vector<32x128xi1>, vector<32x128xf32>
    %9 = vector.extract_strided_slice %1 {offsets = [1, 0], sizes = [1, 128], strides = [1, 1]} : vector<4x128xi32> to vector<1x128xi32>
    %10 = vector.broadcast %9 : vector<1x128xi32> to vector<32x128xi32>
    %11 = arith.cmpi eq, %2, %10 : vector<32x128xi32>
    %cst_4 = arith.constant 1.000000e+00 : f32
    %cst_5 = arith.constant 0.000000e+00 : f32
    %12 = vector.broadcast %cst_4 : f32 to vector<32x128xf32>
    %13 = vector.broadcast %cst_5 : f32 to vector<32x128xf32>
    %14 = arith.select %11, %12, %13 : vector<32x128xi1>, vector<32x128xf32>
    %15 = vector.extract_strided_slice %1 {offsets = [2, 0], sizes = [1, 128], strides = [1, 1]} : vector<4x128xi32> to vector<1x128xi32>
    %16 = vector.broadcast %15 : vector<1x128xi32> to vector<32x128xi32>
    %17 = arith.cmpi eq, %2, %16 : vector<32x128xi32>
    %cst_6 = arith.constant 1.000000e+00 : f32
    %cst_7 = arith.constant 0.000000e+00 : f32
    %18 = vector.broadcast %cst_6 : f32 to vector<32x128xf32>
    %19 = vector.broadcast %cst_7 : f32 to vector<32x128xf32>
    %20 = arith.select %17, %18, %19 : vector<32x128xi1>, vector<32x128xf32>
    %21 = vector.extract_strided_slice %1 {offsets = [3, 0], sizes = [1, 128], strides = [1, 1]} : vector<4x128xi32> to vector<1x128xi32>
    %22 = vector.broadcast %21 : vector<1x128xi32> to vector<32x128xi32>
    %23 = arith.cmpi eq, %2, %22 : vector<32x128xi32>
    %cst_8 = arith.constant 1.000000e+00 : f32
    %cst_9 = arith.constant 0.000000e+00 : f32
    %24 = vector.broadcast %cst_8 : f32 to vector<32x128xf32>
    %25 = vector.broadcast %cst_9 : f32 to vector<32x128xf32>
    %26 = arith.select %23, %24, %25 : vector<32x128xi1>, vector<32x128xf32>
    %27 = tpu.concatenate %8, %14, %20, %26 in 0 : vector<32x128xf32>, vector<32x128xf32>, vector<32x128xf32>, vector<32x128xf32> -> vector<128x128xf32>
    %c0_10 = arith.constant 0 : index
    %c0_11 = arith.constant 0 : index
    %28 = vector.load %arg3[%c0_10, %c0_11] : memref<64x8xf32, #tpu.memory_space<vmem>>, vector<64x8xf32>
    %cst_12 = arith.constant dense<0.000000e+00> : vector<64x128xf32>
    %29 = tpu.matmul %28, %0, %cst_12 {dimension_numbers = #tpu.dot_dimension_numbers<[1], [0], [0], [1], [0, 0, 1, 1], [], []>} : vector<64x8xf32>, vector<8x128xf32>, vector<64x128xf32> -> vector<64x128xf32>
    %c0_13 = arith.constant 0 : index
    %c0_14 = arith.constant 0 : index
    %30 = vector.load %arg4[%c0_13, %c0_14] : memref<64x128xf32, #tpu.memory_space<vmem>>, vector<64x128xf32>
    %cst_15 = arith.constant dense<0.000000e+00> : vector<64x128xf32>
    %31 = tpu.matmul %30, %27, %cst_15 {dimension_numbers = #tpu.dot_dimension_numbers<[1], [0], [0], [1], [0, 0, 1, 1], [], []>} : vector<64x128xf32>, vector<128x128xf32>, vector<64x128xf32> -> vector<64x128xf32>
    %32 = arith.addf %29, %31 : vector<64x128xf32>
    %33 = vector.extract_strided_slice %32 {offsets = [0, 0], sizes = [16, 128], strides = [1, 1]} : vector<64x128xf32> to vector<16x128xf32>
    %34 = vector.extract_strided_slice %32 {offsets = [16, 0], sizes = [16, 128], strides = [1, 1]} : vector<64x128xf32> to vector<16x128xf32>
    %35 = vector.extract_strided_slice %32 {offsets = [32, 0], sizes = [32, 128], strides = [1, 1]} : vector<64x128xf32> to vector<32x128xf32>
    %c0_16 = arith.constant 0 : index
    %c0_17 = arith.constant 0 : index
    %36 = vector.load %arg5[%c0_16, %c0_17] : memref<32x1xf32, #tpu.memory_space<vmem>>, vector<32x1xf32>
    %37 = vector.broadcast %36 : vector<32x1xf32> to vector<32x128xf32>
    %38 = arith.addf %35, %37 : vector<32x128xf32>
    %39 = arith.mulf %33, %33 : vector<16x128xf32>
    %40 = arith.subf %39, %34 : vector<16x128xf32>
    %cst_18 = arith.constant 5.000000e-01 : f32
    %41 = vector.broadcast %cst_18 : f32 to vector<1x16xf32>
    %cst_19 = arith.constant dense<0.000000e+00> : vector<1x128xf32>
    %42 = tpu.matmul %41, %40, %cst_19 {dimension_numbers = #tpu.dot_dimension_numbers<[1], [0], [0], [1], [0, 0, 1, 1], [], []>} : vector<1x16xf32>, vector<16x128xf32>, vector<1x128xf32> -> vector<1x128xf32>
    %c0_20 = arith.constant 0 : index
    %c0_21 = arith.constant 0 : index
    %43 = vector.load %arg6[%c0_20, %c0_21] : memref<32x1xf32, #tpu.memory_space<vmem>>, vector<32x1xf32>
    %c0_22 = arith.constant 0 : index
    %c0_23 = arith.constant 0 : index
    %44 = vector.load %arg7[%c0_22, %c0_23] : memref<32x1xf32, #tpu.memory_space<vmem>>, vector<32x1xf32>
    %cst_24 = arith.constant dense<0.000000e+00> : vector<128xf32>
    %45 = vector.multi_reduction <add>, %38, %cst_24 [0] : vector<32x128xf32> to vector<128xf32>
    %46 = vector.shape_cast %45 : vector<128xf32> to vector<1x128xf32>
    %cst_25 = arith.constant 3.125000e-02 : f32
    %47 = vector.broadcast %cst_25 : f32 to vector<1x128xf32>
    %48 = arith.mulf %46, %47 : vector<1x128xf32>
    %49 = arith.mulf %38, %38 : vector<32x128xf32>
    %cst_26 = arith.constant dense<0.000000e+00> : vector<128xf32>
    %50 = vector.multi_reduction <add>, %49, %cst_26 [0] : vector<32x128xf32> to vector<128xf32>
    %51 = vector.shape_cast %50 : vector<128xf32> to vector<1x128xf32>
    %cst_27 = arith.constant 3.125000e-02 : f32
    %52 = vector.broadcast %cst_27 : f32 to vector<1x128xf32>
    %53 = arith.mulf %51, %52 : vector<1x128xf32>
    %54 = arith.mulf %48, %48 : vector<1x128xf32>
    %55 = arith.subf %53, %54 : vector<1x128xf32>
    %56 = vector.broadcast %48 : vector<1x128xf32> to vector<32x128xf32>
    %57 = arith.subf %38, %56 : vector<32x128xf32>
    %cst_28 = arith.constant 9.99999974E-6 : f32
    %58 = vector.broadcast %cst_28 : f32 to vector<1x128xf32>
    %59 = arith.addf %55, %58 : vector<1x128xf32>
    %60 = math.rsqrt %59 : vector<1x128xf32>
    %61 = vector.broadcast %60 : vector<1x128xf32> to vector<32x128xf32>
    %62 = arith.mulf %57, %61 : vector<32x128xf32>
    %63 = vector.broadcast %43 : vector<32x1xf32> to vector<32x128xf32>
    %64 = arith.mulf %62, %63 : vector<32x128xf32>
    %65 = vector.broadcast %44 : vector<32x1xf32> to vector<32x128xf32>
    %66 = arith.addf %64, %65 : vector<32x128xf32>
    %cst_29 = arith.constant 0.000000e+00 : f32
    %67 = vector.broadcast %cst_29 : f32 to vector<32x128xf32>
    %68 = arith.maximumf %66, %67 : vector<32x128xf32>
    %c0_30 = arith.constant 0 : index
    %c0_31 = arith.constant 0 : index
    %69 = vector.load %arg8[%c0_30, %c0_31] : memref<32x32xf32, #tpu.memory_space<vmem>>, vector<32x32xf32>
    %cst_32 = arith.constant dense<0.000000e+00> : vector<32x128xf32>
    %70 = tpu.matmul %69, %68, %cst_32 {dimension_numbers = #tpu.dot_dimension_numbers<[1], [0], [0], [1], [0, 0, 1, 1], [], []>} : vector<32x32xf32>, vector<32x128xf32>, vector<32x128xf32> -> vector<32x128xf32>
    %c0_33 = arith.constant 0 : index
    %c0_34 = arith.constant 0 : index
    %71 = vector.load %arg9[%c0_33, %c0_34] : memref<32x1xf32, #tpu.memory_space<vmem>>, vector<32x1xf32>
    %72 = vector.broadcast %71 : vector<32x1xf32> to vector<32x128xf32>
    %73 = arith.addf %70, %72 : vector<32x128xf32>
    %c0_35 = arith.constant 0 : index
    %c0_36 = arith.constant 0 : index
    %74 = vector.load %arg10[%c0_35, %c0_36] : memref<32x1xf32, #tpu.memory_space<vmem>>, vector<32x1xf32>
    %c0_37 = arith.constant 0 : index
    %c0_38 = arith.constant 0 : index
    %75 = vector.load %arg11[%c0_37, %c0_38] : memref<32x1xf32, #tpu.memory_space<vmem>>, vector<32x1xf32>
    %cst_39 = arith.constant dense<0.000000e+00> : vector<128xf32>
    %76 = vector.multi_reduction <add>, %73, %cst_39 [0] : vector<32x128xf32> to vector<128xf32>
    %77 = vector.shape_cast %76 : vector<128xf32> to vector<1x128xf32>
    %cst_40 = arith.constant 3.125000e-02 : f32
    %78 = vector.broadcast %cst_40 : f32 to vector<1x128xf32>
    %79 = arith.mulf %77, %78 : vector<1x128xf32>
    %80 = arith.mulf %73, %73 : vector<32x128xf32>
    %cst_41 = arith.constant dense<0.000000e+00> : vector<128xf32>
    %81 = vector.multi_reduction <add>, %80, %cst_41 [0] : vector<32x128xf32> to vector<128xf32>
    %82 = vector.shape_cast %81 : vector<128xf32> to vector<1x128xf32>
    %cst_42 = arith.constant 3.125000e-02 : f32
    %83 = vector.broadcast %cst_42 : f32 to vector<1x128xf32>
    %84 = arith.mulf %82, %83 : vector<1x128xf32>
    %85 = arith.mulf %79, %79 : vector<1x128xf32>
    %86 = arith.subf %84, %85 : vector<1x128xf32>
    %87 = vector.broadcast %79 : vector<1x128xf32> to vector<32x128xf32>
    %88 = arith.subf %73, %87 : vector<32x128xf32>
    %cst_43 = arith.constant 9.99999974E-6 : f32
    %89 = vector.broadcast %cst_43 : f32 to vector<1x128xf32>
    %90 = arith.addf %86, %89 : vector<1x128xf32>
    %91 = math.rsqrt %90 : vector<1x128xf32>
    %92 = vector.broadcast %91 : vector<1x128xf32> to vector<32x128xf32>
    %93 = arith.mulf %88, %92 : vector<32x128xf32>
    %94 = vector.broadcast %74 : vector<32x1xf32> to vector<32x128xf32>
    %95 = arith.mulf %93, %94 : vector<32x128xf32>
    %96 = vector.broadcast %75 : vector<32x1xf32> to vector<32x128xf32>
    %97 = arith.addf %95, %96 : vector<32x128xf32>
    %cst_44 = arith.constant 0.000000e+00 : f32
    %98 = vector.broadcast %cst_44 : f32 to vector<32x128xf32>
    %99 = arith.maximumf %97, %98 : vector<32x128xf32>
    %c0_45 = arith.constant 0 : index
    %c0_46 = arith.constant 0 : index
    %100 = vector.load %arg12[%c0_45, %c0_46] : memref<1x32xf32, #tpu.memory_space<vmem>>, vector<1x32xf32>
    %c0_47 = arith.constant 0 : index
    %c0_48 = arith.constant 0 : index
    %101 = vector.load %arg13[%c0_47, %c0_48] : memref<1x1xf32, #tpu.memory_space<vmem>>, vector<1x1xf32>
    %cst_49 = arith.constant dense<0.000000e+00> : vector<1x128xf32>
    %102 = tpu.matmul %100, %99, %cst_49 {dimension_numbers = #tpu.dot_dimension_numbers<[1], [0], [0], [1], [0, 0, 1, 1], [], []>} : vector<1x32xf32>, vector<32x128xf32>, vector<1x128xf32> -> vector<1x128xf32>
    %103 = arith.addf %42, %102 : vector<1x128xf32>
    %104 = vector.broadcast %101 : vector<1x1xf32> to vector<1x128xf32>
    %105 = arith.addf %103, %104 : vector<1x128xf32>
    %106 = arith.negf %105 : vector<1x128xf32>
    %107 = math.exp %106 : vector<1x128xf32>
    %cst_50 = arith.constant 1.000000e+00 : f32
    %108 = vector.broadcast %cst_50 : f32 to vector<1x128xf32>
    %109 = arith.addf %108, %107 : vector<1x128xf32>
    %110 = arith.divf %108, %109 : vector<1x128xf32>
    %c0_51 = arith.constant 0 : index
    %c0_52 = arith.constant 0 : index
    %111 = vector.load %arg14[%c0_51, %c0_52] : memref<1x128xf32, #tpu.memory_space<vmem>>, vector<1x128xf32>
    tpu.vector_store %arg14[%c0_51, %c0_52], %110 {strides = array<i32>} : memref<1x128xf32, #tpu.memory_space<vmem>>, vector<1x128xf32>,
    return
  }
  func.func @transform_0(%arg0: i32) -> (i32, i32) {
    %c0_i32 = arith.constant 0 : i32
    %c0_i32_0 = arith.constant 0 : i32
    return %c0_i32, %arg0 : i32, i32
  }
  func.func @transform_1(%arg0: i32) -> (i32, i32) {
    %c0_i32 = arith.constant 0 : i32
    %c0_i32_0 = arith.constant 0 : i32
    return %c0_i32, %arg0 : i32, i32
  }
  func.func @transform_2(%arg0: i32) -> (i32, i32) {
    %c0_i32 = arith.constant 0 : i32
    %c0_i32_0 = arith.constant 0 : i32
    %c0_i32_1 = arith.constant 0 : i32
    return %c0_i32, %c0_i32_0 : i32, i32
  }
  func.func @transform_3(%arg0: i32) -> (i32, i32) {
    %c0_i32 = arith.constant 0 : i32
    %c0_i32_0 = arith.constant 0 : i32
    %c0_i32_1 = arith.constant 0 : i32
    return %c0_i32, %c0_i32_0 : i32, i32
  }
  func.func @transform_4(%arg0: i32) -> (i32, i32) {
    %c0_i32 = arith.constant 0 : i32
    %c0_i32_0 = arith.constant 0 : i32
    %c0_i32_1 = arith.constant 0 : i32
    return %c0_i32, %c0_i32_0 : i32, i32
  }
  func.func @transform_5(%arg0: i32) -> (i32, i32) {
    %c0_i32 = arith.constant 0 : i32
    %c0_i32_0 = arith.constant 0 : i32
    %c0_i32_1 = arith.constant 0 : i32
    return %c0_i32, %c0_i32_0 : i32, i32
  }
  func.func @transform_6(%arg0: i32) -> (i32, i32) {
    %c0_i32 = arith.constant 0 : i32
    %c0_i32_0 = arith.constant 0 : i32
    %c0_i32_1 = arith.constant 0 : i32
    return %c0_i32, %c0_i32_0 : i32, i32
  }
  func.func @transform_7(%arg0: i32) -> (i32, i32) {
    %c0_i32 = arith.constant 0 : i32
    %c0_i32_0 = arith.constant 0 : i32
    %c0_i32_1 = arith.constant 0 : i32
    return %c0_i32, %c0_i32_0 : i32, i32
  }
  func.func @transform_8(%arg0: i32) -> (i32, i32) {
    %c0_i32 = arith.constant 0 : i32
    %c0_i32_0 = arith.constant 0 : i32
    %c0_i32_1 = arith.constant 0 : i32
    return %c0_i32, %c0_i32_0 : i32, i32
  }
  func.func @transform_9(%arg0: i32) -> (i32, i32) {
    %c0_i32 = arith.constant 0 : i32
    %c0_i32_0 = arith.constant 0 : i32
    %c0_i32_1 = arith.constant 0 : i32
    return %c0_i32, %c0_i32_0 : i32, i32
  }
  func.func @transform_10(%arg0: i32) -> (i32, i32) {
    %c0_i32 = arith.constant 0 : i32
    %c0_i32_0 = arith.constant 0 : i32
    %c0_i32_1 = arith.constant 0 : i32
    return %c0_i32, %c0_i32_0 : i32, i32
  }
  func.func @transform_11(%arg0: i32) -> (i32, i32) {
    %c0_i32 = arith.constant 0 : i32
    %c0_i32_0 = arith.constant 0 : i32
    %c0_i32_1 = arith.constant 0 : i32
    return %c0_i32, %c0_i32_0 : i32, i32
  }
  func.func @transform_12(%arg0: i32) -> (i32, i32) {
    %c0_i32 = arith.constant 0 : i32
    %c0_i32_0 = arith.constant 0 : i32
    %c0_i32_1 = arith.constant 0 : i32
    return %c0_i32, %c0_i32_0 : i32, i32
  }
  func.func @transform_13(%arg0: i32) -> (i32, i32) {
    %c0_i32 = arith.constant 0 : i32
    %c0_i32_0 = arith.constant 0 : i32
    return %c0_i32, %arg0 : i32, i32
  }
}

</mosaic_0001>

<llo_original>
// kernel: tpu_custom_call.1
$region0: #{tpu_custom_call.1}
  #allocation0 [shape = 'u32[]', space=smem, size = 0x4, offset = 0x4, fixed_abs, tag = 'smem constant byte address 0x4 - core index']
  #allocation1 [shape = 'u32[144,128]{1,0:T(1,128)}', space=vmem, size = 0x12000, scoped, tag = 'internal scratch']
  #allocation2 [shape = 'f32[1,1]{1,0:T(1,128)S(1)}', space=vmem, size = 0x200, scoped, tag = 'scoped memory for tpu_custom_call.1']
  %s0 = inlined_call_operand.vmem [shape: f32[8,128], index: 0, kind: input, shape index: {}]
  %s1 = inlined_call_operand.vmem [shape: s32[4,128], index: 1, kind: input, shape index: {}]
  %s2 = inlined_call_operand.vmem [shape: f32[64,8], index: 2, kind: input, shape index: {}]
  %s3 = inlined_call_operand.vmem [shape: f32[64,128], index: 3, kind: input, shape index: {}]
  %s4 = inlined_call_operand.vmem [shape: f32[32,1], index: 4, kind: input, shape index: {}]
  %s5 = inlined_call_operand.vmem [shape: f32[32,1], index: 5, kind: input, shape index: {}]
  %s6 = inlined_call_operand.vmem [shape: f32[32,1], index: 6, kind: input, shape index: {}]
  %s7 = inlined_call_operand.vmem [shape: f32[32,32], index: 7, kind: input, shape index: {}]
  %s8 = inlined_call_operand.vmem [shape: f32[32,1], index: 8, kind: input, shape index: {}]
  %s9 = inlined_call_operand.vmem [shape: f32[32,1], index: 9, kind: input, shape index: {}]
  %s10 = inlined_call_operand.vmem [shape: f32[32,1], index: 10, kind: input, shape index: {}]
  %s11 = inlined_call_operand.vmem [shape: f32[1,32], index: 11, kind: input, shape index: {}]
  %s12 = inlined_call_operand.<no memory space> [shape: f32[1,1], index: 12, kind: input, shape index: {}]
  %s13 = inlined_call_operand.hbm [shape: f32[1,128], index: 13, kind: output, shape index: {}]
  %s14 = sld [smem:[#allocation0]]
  $region62: #{tpu_custom_call.1} parent=0
    _
  %s16 = ssub.s32 1, %s14
  %s17 = scalar_select 0, %s16, %s14
  %v18 = vstv %s12
  %19 = vst [vmem:[#allocation2] sm:$0x1] %v18
  $region1: #{tpu_custom_call.1} parent=0
    #allocation3 [shape = 'u8[512]{0}', space=vmem, size = 0x400, scoped, tag = 'output window, operand 0, single buffered']
    #allocation4 [shape = 's32[1]{0}', space=sflag, size = 0x4, scoped, tag = 'scoped memory for tpu_custom_call.1']
    %20 = vsyncpa [#allocation4], 0
    // Predicated region
    $region2: #{tpu_custom_call.1} parent=1 // pred_check
      _
    $region3: #{tpu_custom_call.1} parent=1 // pred_check_branch
      %22 = sbr.rel (0) target = $region5
    $region4: #{tpu_custom_call.1} parent=1 // pred_region
      _
    $region5: #{tpu_custom_call.1} parent=1 // pred_fallthru
      _
    // Predicated region
    $region6: #{tpu_custom_call.1} parent=1 // pred_check
      _
    $region7: #{tpu_custom_call.1} parent=1 // pred_check_branch
      %24 = sbr.rel (0) target = $region9
    $region8: #{tpu_custom_call.1} parent=1 // pred_region
      _
    $region9: #{tpu_custom_call.1} parent=1 // pred_fallthru
      _
    // Predicated region
    $region10: #{tpu_custom_call.1} parent=1 // pred_check
      _
    $region11: #{tpu_custom_call.1} parent=1 // pred_check_branch
      %26 = sbr.rel (0) target = $region13
    $region12: #{tpu_custom_call.1} parent=1 // pred_region
      _
    $region13: #{tpu_custom_call.1} parent=1 // pred_fallthru
      _
    // Predicated region
    $region14: #{tpu_custom_call.1} parent=1 // pred_check
      _
    $region15: #{tpu_custom_call.1} parent=1 // pred_check_branch
      %28 = sbr.rel (0) target = $region17
    $region16: #{tpu_custom_call.1} parent=1 // pred_region
      _
    $region17: #{tpu_custom_call.1} parent=1 // pred_fallthru
      _
    // Predicated region
    $region18: #{tpu_custom_call.1} parent=1 // pred_check
      _
    $region19: #{tpu_custom_call.1} parent=1 // pred_check_branch
      %30 = sbr.rel (0) target = $region21
    $region20: #{tpu_custom_call.1} parent=1 // pred_region
      _
    $region21: #{tpu_custom_call.1} parent=1 // pred_fallthru
      _
    // Predicated region
    $region22: #{tpu_custom_call.1} parent=1 // pred_check
      _
    $region23: #{tpu_custom_call.1} parent=1 // pred_check_branch
      %32 = sbr.rel (0) target = $region25
    $region24: #{tpu_custom_call.1} parent=1 // pred_region
      _
    $region25: #{tpu_custom_call.1} parent=1 // pred_fallthru
      _
    // Predicated region
    $region26: #{tpu_custom_call.1} parent=1 // pred_check
      _
    $region27: #{tpu_custom_call.1} parent=1 // pred_check_branch
      %34 = sbr.rel (0) target = $region29
    $region28: #{tpu_custom_call.1} parent=1 // pred_region
      _
    $region29: #{tpu_custom_call.1} parent=1 // pred_fallthru
      _
    // Predicated region
    $region30: #{tpu_custom_call.1} parent=1 // pred_check
      _
    $region31: #{tpu_custom_call.1} parent=1 // pred_check_branch
      %36 = sbr.rel (0) target = $region33
    $region32: #{tpu_custom_call.1} parent=1 // pred_region
      _
    $region33: #{tpu_custom_call.1} parent=1 // pred_fallthru
      _
    // Predicated region
    $region34: #{tpu_custom_call.1} parent=1 // pred_check
      _
    $region35: #{tpu_custom_call.1} parent=1 // pred_check_branch
      %38 = sbr.rel (0) target = $region37
    $region36: #{tpu_custom_call.1} parent=1 // pred_region
      _
    $region37: #{tpu_custom_call.1} parent=1 // pred_fallthru
      _
    // Predicated region
    $region38: #{tpu_custom_call.1} parent=1 // pred_check
      _
    $region39: #{tpu_custom_call.1} parent=1 // pred_check_branch
      %40 = sbr.rel (0) target = $region41
    $region40: #{tpu_custom_call.1} parent=1 // pred_region
      _
    $region41: #{tpu_custom_call.1} parent=1 // pred_fallthru
      _
    // Predicated region
    $region42: #{tpu_custom_call.1} parent=1 // pred_check
      _
    $region43: #{tpu_custom_call.1} parent=1 // pred_check_branch
      %42 = sbr.rel (0) target = $region45
    $region44: #{tpu_custom_call.1} parent=1 // pred_region
      _
    $region45: #{tpu_custom_call.1} parent=1 // pred_fallthru
      _
    // Predicated region
    $region46: #{tpu_custom_call.1} parent=1 // pred_check
      _
    $region47: #{tpu_custom_call.1} parent=1 // pred_check_branch
      %44 = sbr.rel (0) target = $region49
    $region48: #{tpu_custom_call.1} parent=1 // pred_region
      _
    $region49: #{tpu_custom_call.1} parent=1 // pred_fallthru
      _
    // Predicated region
    $region50: #{tpu_custom_call.1} parent=1 // pred_check
      _
    $region51: #{tpu_custom_call.1} parent=1 // pred_check_branch
      %46 = sbr.rel (0) target = $region53
    $region52: #{tpu_custom_call.1} parent=1 // pred_region
      _
    $region53: #{tpu_custom_call.1} parent=1 // pred_fallthru
      _
    %v47 = vld [vmem:[%s0] sm:$0xff]
    %v48 = vld [vmem:[%s1] sm:$0xf]
    %v49 = vlaneseq
    %v50 = vshrl.u32 %v49, 7
    %v51 = vadd.s32 %v50, 8
    %v52 = vadd.s32 %v50, 16
    %v53 = vadd.s32 %v50, 24
    %v54 = vlaneseq
    %v55 = vshrl.u32 %v54, 7
    %v56 = vsub.s32 0, %v55
    %v57 = vrot.slane %v48, %v56
    %vm58 = vcmp.eq.s32.totalorder %v50, %v57
    %vm59 = vcmp.eq.s32.totalorder %v51, %v57
    %vm60 = vcmp.eq.s32.totalorder %v52, %v57
    %vm61 = vcmp.eq.s32.totalorder %v53, %v57
    %v62 = vsel %vm58, 1.0, 0.0
    %v63 = vsel %vm59, 1.0, 0.0
    %v64 = vsel %vm60, 1.0, 0.0
    %v65 = vsel %vm61, 1.0, 0.0
    %v66 = vlaneseq
    %v67 = vshrl.u32 %v66, 7
    %v68 = vsub.s32 1, %v67
    %v69 = vrot.slane %v48, %v68
    %vm70 = vcmp.eq.s32.totalorder %v50, %v69
    %vm71 = vcmp.eq.s32.totalorder %v51, %v69
    %vm72 = vcmp.eq.s32.totalorder %v52, %v69
    %vm73 = vcmp.eq.s32.totalorder %v53, %v69
    %v74 = vsel %vm70, 1.0, 0.0
    %v75 = vsel %vm71, 1.0, 0.0
    %v76 = vsel %vm72, 1.0, 0.0
    %v77 = vsel %vm73, 1.0, 0.0
    %v78 = vlaneseq
    %v79 = vshrl.u32 %v78, 7
    %v80 = vsub.s32 2, %v79
    %v81 = vrot.slane %v48, %v80
    %vm82 = vcmp.eq.s32.totalorder %v50, %v81
    %vm83 = vcmp.eq.s32.totalorder %v51, %v81
    %vm84 = vcmp.eq.s32.totalorder %v52, %v81
    %vm85 = vcmp.eq.s32.totalorder %v53, %v81
    %v86 = vsel %vm82, 1.0, 0.0
    %v87 = vsel %vm83, 1.0, 0.0
    %v88 = vsel %vm84, 1.0, 0.0
    %v89 = vsel %vm85, 1.0, 0.0
    %v90 = vlaneseq
    %v91 = vshrl.u32 %v90, 7
    %v92 = vsub.s32 3, %v91
    %v93 = vrot.slane %v48, %v92
    %vm94 = vcmp.eq.s32.totalorder %v50, %v93
    %vm95 = vcmp.eq.s32.totalorder %v51, %v93
    %vm96 = vcmp.eq.s32.totalorder %v52, %v93
    %vm97 = vcmp.eq.s32.totalorder %v53, %v93
    %v98 = vsel %vm94, 1.0, 0.0
    %v99 = vsel %vm95, 1.0, 0.0
    %v100 = vsel %vm96, 1.0, 0.0
    %v101 = vsel %vm97, 1.0, 0.0
    %v102 = vld [vmem:[%s2] sm:$0xff]
    %v103 = vld [vmem:[%s2 + $0x8] sm:$0xff]
    %v104 = vld [vmem:[%s2 + $0x10] sm:$0xff]
    %v105 = vld [vmem:[%s2 + $0x18] sm:$0xff]
    %v106 = vld [vmem:[%s2 + $0x20] sm:$0xff]
    %v107 = vld [vmem:[%s2 + $0x28] sm:$0xff]
    %v108 = vld [vmem:[%s2 + $0x30] sm:$0xff]
    %v109 = vld [vmem:[%s2 + $0x38] sm:$0xff]
    %v110 = vld [vmem:[%s3] sm:$0xff]
    %v111 = vld [vmem:[%s3 + $0x8] sm:$0xff]
    %v112 = vld [vmem:[%s3 + $0x10] sm:$0xff]
    %v113 = vld [vmem:[%s3 + $0x18] sm:$0xff]
    %v114 = vld [vmem:[%s3 + $0x20] sm:$0xff]
    %v115 = vld [vmem:[%s3 + $0x28] sm:$0xff]
    %v116 = vld [vmem:[%s3 + $0x30] sm:$0xff]
    %v117 = vld [vmem:[%s3 + $0x38] sm:$0xff]
    %118 = vmatprep.subr.mxu0 0.0
    %119 = vmatpush1.msra.mxu0 %v101
    %120 = vmatprep.subr.mxu0 0.0
    %121 = vmatpush1.msra.mxu0 %v100
    %122 = vmatprep.subr.mxu0 0.0
    %123 = vmatpush1.msra.mxu0 %v99
    %124 = vmatprep.subr.mxu0 0.0
    %125 = vmatpush1.msra.mxu0 %v98
    %126 = vmatprep.subr.mxu0 0.0
    %127 = vmatpush1.msra.mxu0 %v89
    %128 = vmatprep.subr.mxu0 0.0
    %129 = vmatpush1.msra.mxu0 %v88
    %130 = vmatprep.subr.mxu0 0.0
    %131 = vmatpush1.msra.mxu0 %v87
    %132 = vmatprep.subr.mxu0 0.0
    %133 = vmatpush1.msra.mxu0 %v86
    %134 = vmatprep.subr.mxu0 0.0
    %135 = vmatpush1.msra.mxu0 %v77
    %136 = vmatprep.subr.mxu0 0.0
    %137 = vmatpush1.msra.mxu0 %v76
    %138 = vmatprep.subr.mxu0 0.0
    %139 = vmatpush1.msra.mxu0 %v75
    %140 = vmatprep.subr.mxu0 0.0
    %141 = vmatpush1.msra.mxu0 %v74
    %142 = vmatprep.subr.mxu0 0.0
    %143 = vmatpush1.msra.mxu0 %v65
    %144 = vmatprep.subr.mxu0 0.0
    %145 = vmatpush1.msra.mxu0 %v64
    %146 = vmatprep.subr.mxu0 0.0
    %147 = vmatpush1.msra.mxu0 %v63
    %148 = vmatprep.subr.mxu0 0.0
    %149 = vmatpush1.msra.mxu0 %v62
    %150 = vmatprep.subr.mxu0 0.0
    %151 = vmatpush2.msra.mxu0 0.0
    %152 = vmatprep.subr.mxu0 0.0
    %153 = vmatpush2.msra.mxu0 0.0
    %154 = vmatprep.subr.mxu0 0.0
    %155 = vmatpush2.msra.mxu0 0.0
    %156 = vmatprep.subr.mxu0 0.0
    %157 = vmatpush2.msra.mxu0 0.0
    %158 = vmatprep.subr.mxu0 0.0
    %159 = vmatpush2.msra.mxu0 0.0
    %160 = vmatprep.subr.mxu0 0.0
    %161 = vmatpush2.msra.mxu0 0.0
    %162 = vmatprep.subr.mxu0 0.0
    %163 = vmatpush2.msra.mxu0 0.0
    %164 = vmatprep.subr.mxu0 0.0
    %165 = vmatpush2.msra.mxu0 0.0
    %166 = vmatprep.subr.mxu0 0.0
    %167 = vmatpush2.msra.mxu0 0.0
    %168 = vmatprep.subr.mxu0 0.0
    %169 = vmatpush2.msra.mxu0 0.0
    %170 = vmatprep.subr.mxu0 0.0
    %171 = vmatpush2.msra.mxu0 0.0
    %172 = vmatprep.subr.mxu0 0.0
    %173 = vmatpush2.msra.mxu0 0.0
    %174 = vmatprep.subr.mxu0 0.0
    %175 = vmatpush2.msra.mxu0 0.0
    %176 = vmatprep.subr.mxu0 0.0
    %177 = vmatpush2.msra.mxu0 0.0
    %178 = vmatprep.subr.mxu0 0.0
    %179 = vmatpush2.msra.mxu0 0.0
    %180 = vmatprep.subr.mxu0 0.0
    %181 = vmatpush2.msra.mxu0 0.0
    %182 = vmatprep.mubr.f32.mxu0 0.0
    %183 = vmatmul.mubr.f32.gmra.mxu0 %v110
    %v184 = vpop.f32.mrf.mxu0
    %v185 = vadd.f32 0.0, %v184
    %v186 = vpop.f32.mrf.mxu0
    %187 = vmatprep.mubr.f32.mxu0 0.0
    %188 = vmatmul.mubr.f32.gmra.mxu0 %v111
    %v189 = vpop.f32.mrf.mxu0
    %v190 = vadd.f32 0.0, %v189
    %v191 = vpop.f32.mrf.mxu0
    %192 = vmatprep.mubr.f32.mxu0 0.0
    %193 = vmatmul.mubr.f32.gmra.mxu0 %v112
    %v194 = vpop.f32.mrf.mxu0
    %v195 = vadd.f32 0.0, %v194
    %v196 = vpop.f32.mrf.mxu0
    %197 = vmatprep.mubr.f32.mxu0 0.0
    %198 = vmatmul.mubr.f32.gmra.mxu0 %v113
    %v199 = vpop.f32.mrf.mxu0
    %v200 = vadd.f32 0.0, %v199
    %v201 = vpop.f32.mrf.mxu0
    %202 = vmatprep.mubr.f32.mxu0 0.0
    %203 = vmatmul.mubr.f32.gmra.mxu0 %v114
    %v204 = vpop.f32.mrf.mxu0
    %v205 = vadd.f32 0.0, %v204
    %v206 = vpop.f32.mrf.mxu0
    %207 = vmatprep.mubr.f32.mxu0 0.0
    %208 = vmatmul.mubr.f32.gmra.mxu0 %v115
    %v209 = vpop.f32.mrf.mxu0
    %v210 = vadd.f32 0.0, %v209
    %v211 = vpop.f32.mrf.mxu0
    %212 = vmatprep.mubr.f32.mxu0 0.0
    %213 = vmatmul.mubr.f32.gmra.mxu0 %v116
    %v214 = vpop.f32.mrf.mxu0
    %v215 = vadd.f32 0.0, %v214
    %v216 = vpop.f32.mrf.mxu0
    %217 = vmatprep.mubr.f32.mxu0 0.0
    %218 = vmatmul.mubr.f32.gmra.mxu0 %v117
    %v219 = vpop.f32.mrf.mxu0
    %v220 = vadd.f32 0.0, %v219
    %v221 = vpop.f32.mrf.mxu0
    %222 = vdwg.mxu0
    %vm223 = vcmask 64512
    %v225 = vsel %vm223, %v102, 0
    %v228 = vsel %vm223, %v103, 0
    %v231 = vsel %vm223, %v104, 0
    %v234 = vsel %vm223, %v105, 0
    %v237 = vsel %vm223, %v106, 0
    %v240 = vsel %vm223, %v107, 0
    %v243 = vsel %vm223, %v108, 0
    %v246 = vsel %vm223, %v109, 0
    %248 = vmatprep.subr.mxu0 0.0
    %249 = vmatpush1.msra.mxu0 0.0
    %250 = vmatprep.subr.mxu0 0.0
    %251 = vmatpush1.msra.mxu0 0.0
    %252 = vmatprep.subr.mxu0 0.0
    %253 = vmatpush1.msra.mxu0 0.0
    %254 = vmatprep.subr.mxu0 0.0
    %255 = vmatpush1.msra.mxu0 0.0
    %256 = vmatprep.subr.mxu0 0.0
    %257 = vmatpush1.msra.mxu0 0.0
    %258 = vmatprep.subr.mxu0 0.0
    %259 = vmatpush1.msra.mxu0 0.0
    %260 = vmatprep.subr.mxu0 0.0
    %261 = vmatpush1.msra.mxu0 0.0
    %262 = vmatprep.subr.mxu0 0.0
    %263 = vmatpush1.msra.mxu0 0.0
    %264 = vmatprep.subr.mxu0 0.0
    %265 = vmatpush1.msra.mxu0 0.0
    %266 = vmatprep.subr.mxu0 0.0
    %267 = vmatpush1.msra.mxu0 0.0
    %268 = vmatprep.subr.mxu0 0.0
    %269 = vmatpush1.msra.mxu0 0.0
    %270 = vmatprep.subr.mxu0 0.0
    %271 = vmatpush1.msra.mxu0 0.0
    %272 = vmatprep.subr.mxu0 0.0
    %273 = vmatpush1.msra.mxu0 0.0
    %274 = vmatprep.subr.mxu0 0.0
    %275 = vmatpush1.msra.mxu0 0.0
    %276 = vmatprep.subr.mxu0 0.0
    %277 = vmatpush1.msra.mxu0 0.0
    %278 = vmatprep.subr.mxu0 0.0
    %279 = vmatpush1.msra.mxu0 %v47
    %280 = vmatprep.subr.mxu0 0.0
    %281 = vmatpush2.msra.mxu0 0.0
    %282 = vmatprep.subr.mxu0 0.0
    %283 = vmatpush2.msra.mxu0 0.0
    %284 = vmatprep.subr.mxu0 0.0
    %285 = vmatpush2.msra.mxu0 0.0
    %286 = vmatprep.subr.mxu0 0.0
    %287 = vmatpush2.msra.mxu0 0.0
    %288 = vmatprep.subr.mxu0 0.0
    %289 = vmatpush2.msra.mxu0 0.0
    %290 = vmatprep.subr.mxu0 0.0
    %291 = vmatpush2.msra.mxu0 0.0
    %292 = vmatprep.subr.mxu0 0.0
    %293 = vmatpush2.msra.mxu0 0.0
    %294 = vmatprep.subr.mxu0 0.0
    %295 = vmatpush2.msra.mxu0 0.0
    %296 = vmatprep.subr.mxu0 0.0
    %297 = vmatpush2.msra.mxu0 0.0
    %298 = vmatprep.subr.mxu0 0.0
    %299 = vmatpush2.msra.mxu0 0.0
    %300 = vmatprep.subr.mxu0 0.0
    %301 = vmatpush2.msra.mxu0 0.0
    %302 = vmatprep.subr.mxu0 0.0
    %303 = vmatpush2.msra.mxu0 0.0
    %304 = vmatprep.subr.mxu0 0.0
    %305 = vmatpush2.msra.mxu0 0.0
    %306 = vmatprep.subr.mxu0 0.0
    %307 = vmatpush2.msra.mxu0 0.0
    %308 = vmatprep.subr.mxu0 0.0
    %309 = vmatpush2.msra.mxu0 0.0
    %310 = vmatprep.subr.mxu0 0.0
    %311 = vmatpush2.msra.mxu0 0.0
    %312 = vmatprep.mubr.f32.mxu0 0.0
    %313 = vmatmul.mubr.f32.gmra.mxu0 %v225
    %v314 = vpop.f32.mrf.mxu0
    %v315 = vadd.f32 %v185, %v314
    %v316 = vpop.f32.mrf.mxu0
    %317 = vmatprep.mubr.f32.mxu0 0.0
    %318 = vmatmul.mubr.f32.gmra.mxu0 %v228
    %v319 = vpop.f32.mrf.mxu0
    %v320 = vadd.f32 %v190, %v319
    %v321 = vpop.f32.mrf.mxu0
    %322 = vmatprep.mubr.f32.mxu0 0.0
    %323 = vmatmul.mubr.f32.gmra.mxu0 %v231
    %v324 = vpop.f32.mrf.mxu0
    %v325 = vadd.f32 %v195, %v324
    %v326 = vpop.f32.mrf.mxu0
    %327 = vmatprep.mubr.f32.mxu0 0.0
    %328 = vmatmul.mubr.f32.gmra.mxu0 %v234
    %v329 = vpop.f32.mrf.mxu0
    %v330 = vadd.f32 %v200, %v329
    %v331 = vpop.f32.mrf.mxu0
    %332 = vmatprep.mubr.f32.mxu0 0.0
    %333 = vmatmul.mubr.f32.gmra.mxu0 %v237
    %v334 = vpop.f32.mrf.mxu0
    %v335 = vadd.f32 %v205, %v334
    %v336 = vpop.f32.mrf.mxu0
    %337 = vmatprep.mubr.f32.mxu0 0.0
    %338 = vmatmul.mubr.f32.gmra.mxu0 %v240
    %v339 = vpop.f32.mrf.mxu0
    %v340 = vadd.f32 %v210, %v339
    %v341 = vpop.f32.mrf.mxu0
    %342 = vmatprep.mubr.f32.mxu0 0.0
    %343 = vmatmul.mubr.f32.gmra.mxu0 %v243
    %v344 = vpop.f32.mrf.mxu0
    %v345 = vadd.f32 %v215, %v344
    %v346 = vpop.f32.mrf.mxu0
    %347 = vmatprep.mubr.f32.mxu0 0.0
    %348 = vmatmul.mubr.f32.gmra.mxu0 %v246
    %v349 = vpop.f32.mrf.mxu0
    %v350 = vadd.f32 %v220, %v349
    %v351 = vpop.f32.mrf.mxu0
    %352 = vdwg.mxu0
    %v353 = vld [vmem:[%s4] sm:$0xff]
    %v354 = vld [vmem:[%s4 + $0x8] sm:$0xff]
    %v355 = vld [vmem:[%s4 + $0x10] sm:$0xff]
    %v356 = vld [vmem:[%s4 + $0x18] sm:$0xff]
    %358 = vset.pattern.permute.xlu0 0
    %359 = vperm.xlu0 %358, %v353
    %v360 = vpop.permute.xlu0 %359
    %363 = vset.pattern.permute.xlu0 0
    %364 = vperm.xlu0 %363, %v354
    %v365 = vpop.permute.xlu0 %364
    %368 = vset.pattern.permute.xlu0 0
    %369 = vperm.xlu0 %368, %v355
    %v370 = vpop.permute.xlu0 %369
    %373 = vset.pattern.permute.xlu0 0
    %374 = vperm.xlu0 %373, %v356
    %v375 = vpop.permute.xlu0 %374
    %v377 = vadd.f32 %v335, %v360
    %v378 = vadd.f32 %v340, %v365
    %v379 = vadd.f32 %v345, %v370
    %v380 = vadd.f32 %v350, %v375
    %v381 = vmul.f32 %v315, %v315
    %v382 = vmul.f32 %v320, %v320
    %v383 = vsub.f32 %v381, %v325
    %v384 = vsub.f32 %v382, %v330
    %v385 = vld [vmem:[%s5] sm:$0xff]
    %v386 = vld [vmem:[%s5 + $0x8] sm:$0xff]
    %v387 = vld [vmem:[%s5 + $0x10] sm:$0xff]
    %v388 = vld [vmem:[%s5 + $0x18] sm:$0xff]
    %v389 = vld [vmem:[%s6] sm:$0xff]
    %v390 = vld [vmem:[%s6 + $0x8] sm:$0xff]
    %v391 = vld [vmem:[%s6 + $0x10] sm:$0xff]
    %v392 = vld [vmem:[%s6 + $0x18] sm:$0xff]
    %v393 = vadd.f32 %v377, %v378
    %v394 = vadd.f32 %v393, %v379
    %v395 = vadd.f32 %v394, %v380
    %v396 = vrot.slane %v395, 4
    %v397 = vadd.f32 %v395, %v396
    %v398 = vrot.slane %v397, 2
    %v399 = vadd.f32 %v397, %v398
    %v400 = vrot.slane %v399, 1
    %v401 = vadd.f32 %v399, %v400
    %v402 = vmul.f32 %v401, 0.03125
    %v403 = vmul.f32 %v377, %v377
    %v404 = vmul.f32 %v378, %v378
    %v405 = vmul.f32 %v379, %v379
    %v406 = vmul.f32 %v380, %v380
    %v407 = vadd.f32 %v403, %v404
    %v408 = vadd.f32 %v407, %v405
    %v409 = vadd.f32 %v408, %v406
    %v410 = vrot.slane %v409, 4
    %v411 = vadd.f32 %v409, %v410
    %v412 = vrot.slane %v411, 2
    %v413 = vadd.f32 %v411, %v412
    %v414 = vrot.slane %v413, 1
    %v415 = vadd.f32 %v413, %v414
    %v416 = vmul.f32 %v415, 0.03125
    %v417 = vmul.f32 %v402, %v402
    %v418 = vsub.f32 %v416, %v417
    %v419 = vsub.f32 %v377, %v402
    %v420 = vsub.f32 %v378, %v402
    %v421 = vsub.f32 %v379, %v402
    %v422 = vsub.f32 %v380, %v402
    %v423 = vadd.f32 %v418, 1e-05
    %v424 = vrsqrt.pop %v423
    %v425 = vmul.f32 %v419, %v424
    %v426 = vmul.f32 %v420, %v424
    %v427 = vmul.f32 %v421, %v424
    %v428 = vmul.f32 %v422, %v424
    %430 = vset.pattern.permute.xlu0 0
    %431 = vperm.xlu0 %430, %v385
    %v432 = vpop.permute.xlu0 %431
    %435 = vset.pattern.permute.xlu0 0
    %436 = vperm.xlu0 %435, %v386
    %v437 = vpop.permute.xlu0 %436
    %440 = vset.pattern.permute.xlu0 0
    %441 = vperm.xlu0 %440, %v387
    %v442 = vpop.permute.xlu0 %441
    %445 = vset.pattern.permute.xlu0 0
    %446 = vperm.xlu0 %445, %v388
    %v447 = vpop.permute.xlu0 %446
    %v449 = vmul.f32 %v425, %v432
    %v450 = vmul.f32 %v426, %v437
    %v451 = vmul.f32 %v427, %v442
    %v452 = vmul.f32 %v428, %v447
    %454 = vset.pattern.permute.xlu0 0
    %455 = vperm.xlu0 %454, %v389
    %v456 = vpop.permute.xlu0 %455
    %459 = vset.pattern.permute.xlu0 0
    %460 = vperm.xlu0 %459, %v390
    %v461 = vpop.permute.xlu0 %460
    %464 = vset.pattern.permute.xlu0 0
    %465 = vperm.xlu0 %464, %v391
    %v466 = vpop.permute.xlu0 %465
    %469 = vset.pattern.permute.xlu0 0
    %470 = vperm.xlu0 %469, %v392
    %v471 = vpop.permute.xlu0 %470
    %v473 = vadd.f32 %v449, %v456
    %v474 = vadd.f32 %v450, %v461
    %v475 = vadd.f32 %v451, %v466
    %v476 = vadd.f32 %v452, %v471
    %v477 = vmax.f32 %v473, 0.0
    %v478 = vmax.f32 %v474, 0.0
    %v479 = vmax.f32 %v475, 0.0
    %v480 = vmax.f32 %v476, 0.0
    %v481 = vld [vmem:[%s7] sm:$0xff]
    %v482 = vld [vmem:[%s7 + $0x8] sm:$0xff]
    %v483 = vld [vmem:[%s7 + $0x10] sm:$0xff]
    %v484 = vld [vmem:[%s7 + $0x18] sm:$0xff]
    %v485 = vld [vmem:[%s8] sm:$0xff]
    %v486 = vld [vmem:[%s8 + $0x8] sm:$0xff]
    %v487 = vld [vmem:[%s8 + $0x10] sm:$0xff]
    %v488 = vld [vmem:[%s8 + $0x18] sm:$0xff]
    %490 = vset.pattern.permute.xlu0 0
    %491 = vperm.xlu0 %490, %v485
    %v492 = vpop.permute.xlu0 %491
    %495 = vset.pattern.permute.xlu0 0
    %496 = vperm.xlu0 %495, %v486
    %v497 = vpop.permute.xlu0 %496
    %500 = vset.pattern.permute.xlu0 0
    %501 = vperm.xlu0 %500, %v487
    %v502 = vpop.permute.xlu0 %501
    %505 = vset.pattern.permute.xlu0 0
    %506 = vperm.xlu0 %505, %v488
    %v507 = vpop.permute.xlu0 %506
    %vm509 = vcmask 261120
    %v511 = vsel %vm509, %v481, 0
    %v514 = vsel %vm509, %v482, 0
    %v517 = vsel %vm509, %v483, 0
    %v520 = vsel %vm509, %v484, 0
    %522 = vmatprep.subr.mxu0 0.0
    %523 = vmatpush1.msra.mxu0 0.0
    %524 = vmatprep.subr.mxu0 0.0
    %525 = vmatpush1.msra.mxu0 0.0
    %526 = vmatprep.subr.mxu0 0.0
    %527 = vmatpush1.msra.mxu0 0.0
    %528 = vmatprep.subr.mxu0 0.0
    %529 = vmatpush1.msra.mxu0 0.0
    %530 = vmatprep.subr.mxu0 0.0
    %531 = vmatpush1.msra.mxu0 0.0
    %532 = vmatprep.subr.mxu0 0.0
    %533 = vmatpush1.msra.mxu0 0.0
    %534 = vmatprep.subr.mxu0 0.0
    %535 = vmatpush1.msra.mxu0 0.0
    %536 = vmatprep.subr.mxu0 0.0
    %537 = vmatpush1.msra.mxu0 0.0
    %538 = vmatprep.subr.mxu0 0.0
    %539 = vmatpush1.msra.mxu0 0.0
    %540 = vmatprep.subr.mxu0 0.0
    %541 = vmatpush1.msra.mxu0 0.0
    %542 = vmatprep.subr.mxu0 0.0
    %543 = vmatpush1.msra.mxu0 0.0
    %544 = vmatprep.subr.mxu0 0.0
    %545 = vmatpush1.msra.mxu0 0.0
    %546 = vmatprep.subr.mxu0 0.0
    %547 = vmatpush1.msra.mxu0 %v480
    %548 = vmatprep.subr.mxu0 0.0
    %549 = vmatpush1.msra.mxu0 %v479
    %550 = vmatprep.subr.mxu0 0.0
    %551 = vmatpush1.msra.mxu0 %v478
    %552 = vmatprep.subr.mxu0 0.0
    %553 = vmatpush1.msra.mxu0 %v477
    %554 = vmatprep.subr.mxu0 0.0
    %555 = vmatpush2.msra.mxu0 0.0
    %556 = vmatprep.subr.mxu0 0.0
    %557 = vmatpush2.msra.mxu0 0.0
    %558 = vmatprep.subr.mxu0 0.0
    %559 = vmatpush2.msra.mxu0 0.0
    %560 = vmatprep.subr.mxu0 0.0
    %561 = vmatpush2.msra.mxu0 0.0
    %562 = vmatprep.subr.mxu0 0.0
    %563 = vmatpush2.msra.mxu0 0.0
    %564 = vmatprep.subr.mxu0 0.0
    %565 = vmatpush2.msra.mxu0 0.0
    %566 = vmatprep.subr.mxu0 0.0
    %567 = vmatpush2.msra.mxu0 0.0
    %568 = vmatprep.subr.mxu0 0.0
    %569 = vmatpush2.msra.mxu0 0.0
    %570 = vmatprep.subr.mxu0 0.0
    %571 = vmatpush2.msra.mxu0 0.0
    %572 = vmatprep.subr.mxu0 0.0
    %573 = vmatpush2.msra.mxu0 0.0
    %574 = vmatprep.subr.mxu0 0.0
    %575 = vmatpush2.msra.mxu0 0.0
    %576 = vmatprep.subr.mxu0 0.0
    %577 = vmatpush2.msra.mxu0 0.0
    %578 = vmatprep.subr.mxu0 0.0
    %579 = vmatpush2.msra.mxu0 0.0
    %580 = vmatprep.subr.mxu0 0.0
    %581 = vmatpush2.msra.mxu0 0.0
    %582 = vmatprep.subr.mxu0 0.0
    %583 = vmatpush2.msra.mxu0 0.0
    %584 = vmatprep.subr.mxu0 0.0
    %585 = vmatpush2.msra.mxu0 0.0
    %586 = vmatprep.mubr.f32.mxu0 0.0
    %587 = vmatmul.mubr.f32.gmra.mxu0 %v511
    %v588 = vpop.f32.mrf.mxu0
    %v589 = vadd.f32 %v492, %v588
    %v590 = vpop.f32.mrf.mxu0
    %591 = vmatprep.mubr.f32.mxu0 0.0
    %592 = vmatmul.mubr.f32.gmra.mxu0 %v514
    %v593 = vpop.f32.mrf.mxu0
    %v594 = vadd.f32 %v497, %v593
    %v595 = vpop.f32.mrf.mxu0
    %596 = vmatprep.mubr.f32.mxu0 0.0
    %597 = vmatmul.mubr.f32.gmra.mxu0 %v517
    %v598 = vpop.f32.mrf.mxu0
    %v599 = vadd.f32 %v502, %v598
    %v600 = vpop.f32.mrf.mxu0
    %601 = vmatprep.mubr.f32.mxu0 0.0
    %602 = vmatmul.mubr.f32.gmra.mxu0 %v520
    %v603 = vpop.f32.mrf.mxu0
    %v604 = vadd.f32 %v507, %v603
    %v605 = vpop.f32.mrf.mxu0
    %606 = vdwg.mxu0
    %v607 = vld [vmem:[%s9] sm:$0xff]
    %v608 = vld [vmem:[%s9 + $0x8] sm:$0xff]
    %v609 = vld [vmem:[%s9 + $0x10] sm:$0xff]
    %v610 = vld [vmem:[%s9 + $0x18] sm:$0xff]
    %v611 = vld [vmem:[%s10] sm:$0xff]
    %v612 = vld [vmem:[%s10 + $0x8] sm:$0xff]
    %v613 = vld [vmem:[%s10 + $0x10] sm:$0xff]
    %v614 = vld [vmem:[%s10 + $0x18] sm:$0xff]
    %v615 = vadd.f32 %v589, %v594
    %v616 = vadd.f32 %v615, %v599
    %v617 = vadd.f32 %v616, %v604
    %v618 = vrot.slane %v617, 4
    %v619 = vadd.f32 %v617, %v618
    %v620 = vrot.slane %v619, 2
    %v621 = vadd.f32 %v619, %v620
    %v622 = vrot.slane %v621, 1
    %v623 = vadd.f32 %v621, %v622
    %v624 = vmul.f32 %v623, 0.03125
    %v625 = vmul.f32 %v589, %v589
    %v626 = vmul.f32 %v594, %v594
    %v627 = vmul.f32 %v599, %v599
    %v628 = vmul.f32 %v604, %v604
    %v629 = vadd.f32 %v625, %v626
    %v630 = vadd.f32 %v629, %v627
    %v631 = vadd.f32 %v630, %v628
    %v632 = vrot.slane %v631, 4
    %v633 = vadd.f32 %v631, %v632
    %v634 = vrot.slane %v633, 2
    %v635 = vadd.f32 %v633, %v634
    %v636 = vrot.slane %v635, 1
    %v637 = vadd.f32 %v635, %v636
    %v638 = vmul.f32 %v637, 0.03125
    %v639 = vmul.f32 %v624, %v624
    %v640 = vsub.f32 %v638, %v639
    %v641 = vsub.f32 %v589, %v624
    %v642 = vsub.f32 %v594, %v624
    %v643 = vsub.f32 %v599, %v624
    %v644 = vsub.f32 %v604, %v624
    %v645 = vadd.f32 %v640, 1e-05
    %v646 = vrsqrt.pop %v645
    %v647 = vmul.f32 %v641, %v646
    %v648 = vmul.f32 %v642, %v646
    %v649 = vmul.f32 %v643, %v646
    %v650 = vmul.f32 %v644, %v646
    %652 = vset.pattern.permute.xlu0 0
    %653 = vperm.xlu0 %652, %v607
    %v654 = vpop.permute.xlu0 %653
    %657 = vset.pattern.permute.xlu0 0
    %658 = vperm.xlu0 %657, %v608
    %v659 = vpop.permute.xlu0 %658
    %662 = vset.pattern.permute.xlu0 0
    %663 = vperm.xlu0 %662, %v609
    %v664 = vpop.permute.xlu0 %663
    %667 = vset.pattern.permute.xlu0 0
    %668 = vperm.xlu0 %667, %v610
    %v669 = vpop.permute.xlu0 %668
    %v671 = vmul.f32 %v647, %v654
    %v672 = vmul.f32 %v648, %v659
    %v673 = vmul.f32 %v649, %v664
    %v674 = vmul.f32 %v650, %v669
    %676 = vset.pattern.permute.xlu0 0
    %677 = vperm.xlu0 %676, %v611
    %v678 = vpop.permute.xlu0 %677
    %681 = vset.pattern.permute.xlu0 0
    %682 = vperm.xlu0 %681, %v612
    %v683 = vpop.permute.xlu0 %682
    %686 = vset.pattern.permute.xlu0 0
    %687 = vperm.xlu0 %686, %v613
    %v688 = vpop.permute.xlu0 %687
    %691 = vset.pattern.permute.xlu0 0
    %692 = vperm.xlu0 %691, %v614
    %v693 = vpop.permute.xlu0 %692
    %v695 = vadd.f32 %v671, %v678
    %v696 = vadd.f32 %v672, %v683
    %v697 = vadd.f32 %v673, %v688
    %v698 = vadd.f32 %v674, %v693
    %v699 = vmax.f32 %v695, 0.0
    %v700 = vmax.f32 %v696, 0.0
    %v701 = vmax.f32 %v697, 0.0
    %v702 = vmax.f32 %v698, 0.0
    %v703 = vld [vmem:[%s11] sm:$0x1]
    %v704 = vld [vmem:[#allocation2] sm:$0x1]
    %v706 = vsel %vm509, %v703, 0
    %708 = vmatprep.subr.mxu0 0.0
    %709 = vmatpush1.msra.mxu0 0.0
    %710 = vmatprep.subr.mxu0 0.0
    %711 = vmatpush1.msra.mxu0 0.0
    %712 = vmatprep.subr.mxu0 0.0
    %713 = vmatpush1.msra.mxu0 0.0
    %714 = vmatprep.subr.mxu0 0.0
    %715 = vmatpush1.msra.mxu0 0.0
    %716 = vmatprep.subr.mxu0 0.0
    %717 = vmatpush1.msra.mxu0 0.0
    %718 = vmatprep.subr.mxu0 0.0
    %719 = vmatpush1.msra.mxu0 0.0
    %720 = vmatprep.subr.mxu0 0.0
    %721 = vmatpush1.msra.mxu0 0.0
    %722 = vmatprep.subr.mxu0 0.0
    %723 = vmatpush1.msra.mxu0 0.0
    %724 = vmatprep.subr.mxu0 0.0
    %725 = vmatpush1.msra.mxu0 0.0
    %726 = vmatprep.subr.mxu0 0.0
    %727 = vmatpush1.msra.mxu0 0.0
    %728 = vmatprep.subr.mxu0 0.0
    %729 = vmatpush1.msra.mxu0 0.0
    %730 = vmatprep.subr.mxu0 0.0
    %731 = vmatpush1.msra.mxu0 0.0
    %732 = vmatprep.subr.mxu0 0.0
    %733 = vmatpush1.msra.mxu0 %v702
    %734 = vmatprep.subr.mxu0 0.0
    %735 = vmatpush1.msra.mxu0 %v701
    %736 = vmatprep.subr.mxu0 0.0
    %737 = vmatpush1.msra.mxu0 %v700
    %738 = vmatprep.subr.mxu0 0.0
    %739 = vmatpush1.msra.mxu0 %v699
    %740 = vmatprep.subr.mxu0 0.0
    %741 = vmatpush2.msra.mxu0 0.0
    %742 = vmatprep.subr.mxu0 0.0
    %743 = vmatpush2.msra.mxu0 0.0
    %744 = vmatprep.subr.mxu0 0.0
    %745 = vmatpush2.msra.mxu0 0.0
    %746 = vmatprep.subr.mxu0 0.0
    %747 = vmatpush2.msra.mxu0 0.0
    %748 = vmatprep.subr.mxu0 0.0
    %749 = vmatpush2.msra.mxu0 0.0
    %750 = vmatprep.subr.mxu0 0.0
    %751 = vmatpush2.msra.mxu0 0.0
    %752 = vmatprep.subr.mxu0 0.0
    %753 = vmatpush2.msra.mxu0 0.0
    %754 = vmatprep.subr.mxu0 0.0
    %755 = vmatpush2.msra.mxu0 0.0
    %756 = vmatprep.subr.mxu0 0.0
    %757 = vmatpush2.msra.mxu0 0.0
    %758 = vmatprep.subr.mxu0 0.0
    %759 = vmatpush2.msra.mxu0 0.0
    %760 = vmatprep.subr.mxu0 0.0
    %761 = vmatpush2.msra.mxu0 0.0
    %762 = vmatprep.subr.mxu0 0.0
    %763 = vmatpush2.msra.mxu0 0.0
    %764 = vmatprep.subr.mxu0 0.0
    %765 = vmatpush2.msra.mxu0 0.0
    %766 = vmatprep.subr.mxu0 0.0
    %767 = vmatpush2.msra.mxu0 0.0
    %768 = vmatprep.subr.mxu0 0.0
    %769 = vmatpush2.msra.mxu0 0.0
    %770 = vmatprep.subr.mxu0 0.0
    %771 = vmatpush2.msra.mxu0 0.0
    %772 = vmatprep.mubr.f32.mxu0 0.0
    %773 = vmatmul.mubr.f32.gmra.mxu0 %v706
    %v774 = vpop.f32.mrf.mxu0
    %v775 = vadd.f32 0.0, %v774
    %v776 = vpop.f32.mrf.mxu0
    %777 = vdwg.mxu0
    %vm778 = vcmask 130048
    %v780 = vsel %vm778, 0.5, 0
    %782 = vmatprep.subr.mxu0 0.0
    %783 = vmatpush1.msra.mxu0 0.0
    %784 = vmatprep.subr.mxu0 0.0
    %785 = vmatpush1.msra.mxu0 0.0
    %786 = vmatprep.subr.mxu0 0.0
    %787 = vmatpush1.msra.mxu0 0.0
    %788 = vmatprep.subr.mxu0 0.0
    %789 = vmatpush1.msra.mxu0 0.0
    %790 = vmatprep.subr.mxu0 0.0
    %791 = vmatpush1.msra.mxu0 0.0
    %792 = vmatprep.subr.mxu0 0.0
    %793 = vmatpush1.msra.mxu0 0.0
    %794 = vmatprep.subr.mxu0 0.0
    %795 = vmatpush1.msra.mxu0 0.0
    %796 = vmatprep.subr.mxu0 0.0
    %797 = vmatpush1.msra.mxu0 0.0
    %798 = vmatprep.subr.mxu0 0.0
    %799 = vmatpush1.msra.mxu0 0.0
    %800 = vmatprep.subr.mxu0 0.0
    %801 = vmatpush1.msra.mxu0 0.0
    %802 = vmatprep.subr.mxu0 0.0
    %803 = vmatpush1.msra.mxu0 0.0
    %804 = vmatprep.subr.mxu0 0.0
    %805 = vmatpush1.msra.mxu0 0.0
    %806 = vmatprep.subr.mxu0 0.0
    %807 = vmatpush1.msra.mxu0 0.0
    %808 = vmatprep.subr.mxu0 0.0
    %809 = vmatpush1.msra.mxu0 0.0
    %810 = vmatprep.subr.mxu0 0.0
    %811 = vmatpush1.msra.mxu0 %v384
    %812 = vmatprep.subr.mxu0 0.0
    %813 = vmatpush1.msra.mxu0 %v383
    %814 = vmatprep.subr.mxu0 0.0
    %815 = vmatpush2.msra.mxu0 0.0
    %816 = vmatprep.subr.mxu0 0.0
    %817 = vmatpush2.msra.mxu0 0.0
    %818 = vmatprep.subr.mxu0 0.0
    %819 = vmatpush2.msra.mxu0 0.0
    %820 = vmatprep.subr.mxu0 0.0
    %821 = vmatpush2.msra.mxu0 0.0
    %822 = vmatprep.subr.mxu0 0.0
    %823 = vmatpush2.msra.mxu0 0.0
    %824 = vmatprep.subr.mxu0 0.0
    %825 = vmatpush2.msra.mxu0 0.0
    %826 = vmatprep.subr.mxu0 0.0
    %827 = vmatpush2.msra.mxu0 0.0
    %828 = vmatprep.subr.mxu0 0.0
    %829 = vmatpush2.msra.mxu0 0.0
    %830 = vmatprep.subr.mxu0 0.0
    %831 = vmatpush2.msra.mxu0 0.0
    %832 = vmatprep.subr.mxu0 0.0
    %833 = vmatpush2.msra.mxu0 0.0
    %834 = vmatprep.subr.mxu0 0.0
    %835 = vmatpush2.msra.mxu0 0.0
    %836 = vmatprep.subr.mxu0 0.0
    %837 = vmatpush2.msra.mxu0 0.0
    %838 = vmatprep.subr.mxu0 0.0
    %839 = vmatpush2.msra.mxu0 0.0
    %840 = vmatprep.subr.mxu0 0.0
    %841 = vmatpush2.msra.mxu0 0.0
    %842 = vmatprep.subr.mxu0 0.0
    %843 = vmatpush2.msra.mxu0 0.0
    %844 = vmatprep.subr.mxu0 0.0
    %845 = vmatpush2.msra.mxu0 0.0
    %846 = vmatprep.mubr.f32.mxu0 0.0
    %847 = vmatmul.mubr.f32.gmra.mxu0 %v780
    %v848 = vpop.f32.mrf.mxu0
    %v849 = vadd.f32 %v775, %v848
    %v850 = vpop.f32.mrf.mxu0
    %851 = vdwg.mxu0
    %853 = vset.pattern.permute.xlu0 0
    %854 = vperm.xlu0 %853, %v704
    %v855 = vpop.permute.xlu0 %854
    %v857 = vlaneseq
    %v858 = vshrl.u32 %v857, 7
    %v859 = vsub.s32 0, %v858
    %v860 = vrot.slane %v855, %v859
    %v861 = vadd.f32 %v849, %v860
    %v862 = vxor.u32 %v861, 2147483648
    %v863 = vmul.f32 %v862, 1.442695
    %v864 = vpow.pop %v863
    %v865 = vadd.f32 %v864, 1.0
    %v866 = vrcp.pop %v865
    %v867 = vmul.f32 1.0, %v866
    %868 = vst [vmem:[#allocation3] sm:$0x1] %v867
    // Predicated region
    $region54: #{tpu_custom_call.1} parent=1 // pred_check
      _
    $region55: #{tpu_custom_call.1} parent=1 // pred_check_branch
      %870 = sbr.rel (0) target = $region57
    $region56: #{tpu_custom_call.1} parent=1 // pred_region
      %s872 = ssub.s32 16, 16
      %873 = vsyncadd [#allocation4], %s872
      %s875 = sshll.u32 [#allocation3], 4
      %s876 = int_to_ptr.vmem [resolvable:$true] %s875
      %878 = dma.vmem_to_hbm [thread:$0]  %s876, 16, %s13, [#allocation4]
    $region57: #{tpu_custom_call.1} parent=1 // pred_fallthru
      _
    // Predicated region
    $region58: #{tpu_custom_call.1} parent=1 // pred_check
      _
    $region59: #{tpu_custom_call.1} parent=1 // pred_check_branch
      %880 = sbr.rel (0) target = $region61
    $region60: #{tpu_custom_call.1} parent=1 // pred_region
      %881 = dma.done [#allocation4], 16
    $region61: #{tpu_custom_call.1} parent=1 // pred_fallthru
      _
    %882 = vsyncpa [#allocation4], 1

</llo_original>
